<compile_context>
chip_gen: v7x
topology: tpu7x:2x2x1
jax: 0.10.0
libtpu: 0.0.40
codegen_flags: <defaults>
</compile_context>

<pallas_src>
import jax
import jax.numpy as jnp
from jax.experimental import pallas as pl
from jax.experimental.pallas import tpu as pltpu


def atten_feature_kernel(fs_ref, aw_ref, wf_ref, bf_ref,
                         attfs_ref, attvec_ref, imgfs_ref):
    # fs_ref : (TB, R, F)  visual features, regions in sublanes, features in lanes
    # aw_ref : (I, F)      V_n @ W_2  (attention-score weight, batch-invariant)
    # wf_ref : (F, Vd)     fused linear weight  W_l1.T @ W_l2.T
    # bf_ref : (1, 1, Vd)  fused linear bias    b_l1 @ W_l2.T + b_l2
    tb, r, f = fs_ref.shape
    i = aw_ref.shape[0]
    vd = wf_ref.shape[1]

    fs = fs_ref[...]                 # compute dtype follows the input dtype
    cdt = fs.dtype

    # Attention scores directly in (TB, I, R) layout -> no in-kernel transpose.
    # scores[b,i,r] = sum_f (V_n W_2)[i,f] * Fs[b,f,r]
    aw_b = jnp.broadcast_to(aw_ref[...][None, :, :], (tb, i, f))
    scores = jnp.einsum('bif,brf->bir', aw_b, fs,
                        preferred_element_type=jnp.float32)       # (TB, I, R) f32

    # Softmax over regions (last / lane axis), exact f32 math.
    scores = scores - jnp.max(scores, axis=-1, keepdims=True)
    e = jnp.exp(scores)
    inv_denom = 1.0 / jnp.sum(e, axis=-1, keepdims=True)          # (TB, I, 1)
    a = e * inv_denom                                             # (TB, I, R) f32

    # AttFs[b,i,f] = sum_r a[b,i,r] * Fs[b,f,r]
    attfs = jnp.einsum('bir,brf->bif', a.astype(cdt), fs,
                       preferred_element_type=jnp.float32)        # (TB, I, F) f32
    attfs_ref[...] = attfs.astype(attfs_ref.dtype)

    # Fused linear_2(linear_1(.)): single (TB,I,F) x (F,Vd) matmul + bias.
    wf_b = jnp.broadcast_to(wf_ref[...][None, :, :], (tb, f, vd))
    attvec = jnp.einsum('bif,bfv->biv', attfs.astype(wf_ref.dtype), wf_b,
                        preferred_element_type=jnp.float32)
    attvec = attvec + bf_ref[...]
    attvec_ref[...] = attvec.astype(attvec_ref.dtype)

    # Img_Fs = mean over regions -> (TB, 1, F), lane-dense store.
    imgfs_ref[...] = jnp.mean(fs.astype(jnp.float32), axis=1,
                              keepdims=True).astype(imgfs_ref.dtype)


def _pick_batch_tile(B, max_tile=8):
    # Largest divisor of B (<= max_tile) that still leaves >= 2 grid steps,
    # so both v7x TensorCores get work and no batch padding is needed.
    best = 1
    for d in range(1, min(B, max_tile) + 1):
        if B % d == 0 and B // d >= 2:
            best = d
    return best


def atten_feature_forward(Fs_nchw, V_n, W_2, W_l1, b_l1, W_l2, b_l2,
                          *, batch_tile=None,
                          vmem_limit_bytes=48 * 1024 * 1024):
    B, F_dim, H, W = Fs_nchw.shape
    R = H * W
    I = V_n.shape[0]
    Vd = W_l2.shape[0]
    out_dtype = Fs_nchw.dtype

    # (B, R, F): feature dim in lanes so every matmul is in natural MXU form.
    # TODO(synk): if the producer can emit NHWC activations, drop this
    # transpose (saves a full HBM round-trip over the largest input).
    fs = jnp.transpose(Fs_nchw.reshape(B, F_dim, R), (0, 2, 1))

    # Batch-invariant algebra hoisted to XLA (runs once per call):
    #   * attention-score weight  V_n @ W_2                      : (I, F)
    #   * linear_1 / linear_2 fused (no nonlinearity between them):
    #       AttVec = AttFs @ (W_l1.T @ W_l2.T) + (b_l1 @ W_l2.T + b_l2)
    a_w = jnp.dot(V_n, W_2).astype(out_dtype)                     # (I, F)
    w_fused = jnp.dot(W_l1.T, W_l2.T).astype(out_dtype)           # (F, Vd)
    b_fused = (jnp.dot(b_l1, W_l2.T) + b_l2).reshape(1, 1, Vd).astype(jnp.float32)

    TB = _pick_batch_tile(B) if batch_tile is None else int(batch_tile)
    Bp = pl.cdiv(B, TB) * TB
    if Bp != B:  # only hit when an explicit batch_tile does not divide B
        fs = jnp.pad(fs, ((0, Bp - B), (0, 0), (0, 0)))
    grid = (Bp // TB,)

    attfs, attvec, imgfs = pl.pallas_call(
        atten_feature_kernel,
        out_shape=(
            jax.ShapeDtypeStruct((Bp, I, F_dim), out_dtype),      # AttFs
            jax.ShapeDtypeStruct((Bp, I, Vd), out_dtype),         # AttVec
            jax.ShapeDtypeStruct((Bp, 1, F_dim), out_dtype),      # Img_Fs
        ),
        grid=grid,
        in_specs=[
            pl.BlockSpec((TB, R, F_dim), lambda b: (b, 0, 0)),    # Fs (B, R, F)
            pl.BlockSpec((I, F_dim), lambda b: (0, 0)),           # V_n @ W_2
            pl.BlockSpec((F_dim, Vd), lambda b: (0, 0)),          # fused weight
            pl.BlockSpec((1, 1, Vd), lambda b: (0, 0, 0)),        # fused bias
        ],
        out_specs=[
            pl.BlockSpec((TB, I, F_dim), lambda b: (b, 0, 0)),    # AttFs
            pl.BlockSpec((TB, I, Vd), lambda b: (b, 0, 0)),       # AttVec
            pl.BlockSpec((TB, 1, F_dim), lambda b: (b, 0, 0)),    # Img_Fs
        ],
        compiler_params=pltpu.CompilerParams(
            dimension_semantics=("parallel",),
            vmem_limit_bytes=int(vmem_limit_bytes)),
    )(fs, a_w, w_fused, b_fused)

    return {
        "AttFs": attfs[:B],
        "AttVec": attvec[:B],
        "Img_Fs": imgfs[:B, 0],
    }


def ref_forward(Fs_nchw, V_n, W_2, W_l1, b_l1, W_l2, b_l2):
    # Faithful (unfused) reference of the PyTorch module's forward().
    B, F_dim, H, W = Fs_nchw.shape
    fs = Fs_nchw.reshape(B, F_dim, H * W)
    A = jnp.einsum('iv,vf,bfr->bir', V_n, W_2, fs)
    A = jax.nn.softmax(A, axis=-1)
    AttFs = jnp.einsum('bir,bfr->bif', A, fs)
    lin1 = AttFs @ W_l1.T + b_l1
    AttVec = lin1 @ W_l2.T + b_l2
    ImgFs = jnp.mean(fs, axis=-1)
    return AttFs, AttVec, ImgFs


if __name__ == "__main__":
    # Small shapes consistent with the module (NCHW visual feature map).
    B, dim_f, H, W = 4, 32, 4, 4
    dim_att, dim_v = 8, 16

    key = jax.random.PRNGKey(0)
    k_fs, k_w2v, k_l1w, k_l1b, k_l2w, k_l2b, k_w2 = jax.random.split(key, 7)

    Fs = jax.random.normal(k_fs, (B, dim_f, H, W), dtype=jnp.float32)

    # Parameters (as in the module __init__):
    w2v_att = jax.random.normal(k_w2v, (dim_att, dim_v), dtype=jnp.float32)
    # F.normalize(w2v_att): row-wise L2 normalization (dim=1, eps=1e-12);
    # normalize_V defaults to False, so V_n == this.
    V_n = w2v_att / jnp.maximum(
        jnp.linalg.norm(w2v_att, axis=1, keepdims=True), 1e-12)
    W_2_zero = jnp.zeros((dim_v, dim_f), dtype=jnp.float32)   # zero-init as in module
    W_2_rand = 0.05 * jax.random.normal(k_w2, (dim_v, dim_f), dtype=jnp.float32)
    W_l1 = 0.1 * jax.random.normal(k_l1w, (dim_v * 3, dim_f), dtype=jnp.float32)
    b_l1 = 0.1 * jax.random.normal(k_l1b, (dim_v * 3,), dtype=jnp.float32)
    W_l2 = 0.1 * jax.random.normal(k_l2w, (dim_v, dim_v * 3), dtype=jnp.float32)
    b_l2 = 0.1 * jax.random.normal(k_l2b, (dim_v,), dtype=jnp.float32)

    # Check both the faithful zero-initialized W_2 (uniform attention) and a
    # non-trivial W_2 (exercises the softmax / attention path).
    for W_2 in (W_2_zero, W_2_rand):
        out = atten_feature_forward(Fs, V_n, W_2, W_l1, b_l1, W_l2, b_l2)
        jax.block_until_ready(out)

        ref_attfs, ref_attvec, ref_imgfs = ref_forward(
            Fs, V_n, W_2, W_l1, b_l1, W_l2, b_l2)

        assert jnp.allclose(out["AttFs"], ref_attfs, atol=1e-3, rtol=1e-3), "AttFs mismatch"
        assert jnp.allclose(out["AttVec"], ref_attvec, atol=1e-3, rtol=1e-3), "AttVec mismatch"
        assert jnp.allclose(out["Img_Fs"], ref_imgfs, atol=1e-3, rtol=1e-3), "Img_Fs mismatch"

    print("KERNEL_OK")
</pallas_src>

<mosaic_0001>
module attributes {stable_mosaic.version = 11 : i64} {
  func.func @atten_feature_kernel(%arg0: i32, %arg1: memref<2x16x32xf32, #tpu.memory_space<vmem>>, %arg2: memref<8x32xf32, #tpu.memory_space<vmem>>, %arg3: memref<32x16xf32, #tpu.memory_space<vmem>>, %arg4: memref<1x1x16xf32, #tpu.memory_space<vmem>>, %arg5: memref<2x8x32xf32, #tpu.memory_space<vmem>>, %arg6: memref<2x8x16xf32, #tpu.memory_space<vmem>>, %arg7: memref<2x1x32xf32, #tpu.memory_space<vmem>>) attributes {dimension_semantics = [#tpu.dimension_semantics<parallel>], iteration_bounds = array<i64: 2>, scalar_prefetch = 0 : i64, scratch_operands = 0 : i64, tpu.core_type = #tpu.core_type<tc>, window_params = [{transform_indices = @transform_0, window_bounds = array<i64: 2, 16, 32>}, {pipeline_mode = #tpu.pipeline_mode<synchronous>, transform_indices = @transform_1, window_bounds = array<i64: 8, 32>}, {pipeline_mode = #tpu.pipeline_mode<synchronous>, transform_indices = @transform_2, window_bounds = array<i64: 32, 16>}, {pipeline_mode = #tpu.pipeline_mode<synchronous>, transform_indices = @transform_3, window_bounds = array<i64: 1, 1, 16>}, {transform_indices = @transform_4, window_bounds = array<i64: 2, 8, 32>}, {transform_indices = @transform_5, window_bounds = array<i64: 2, 8, 16>}, {transform_indices = @transform_6, window_bounds = array<i64: 2, 1, 32>}]} {
    %c0 = arith.constant 0 : index
    %c0_0 = arith.constant 0 : index
    %c0_1 = arith.constant 0 : index
    %0 = vector.load %arg1[%c0, %c0_0, %c0_1] : memref<2x16x32xf32, #tpu.memory_space<vmem>>, vector<2x16x32xf32>
    %c0_2 = arith.constant 0 : index
    %c0_3 = arith.constant 0 : index
    %1 = vector.load %arg2[%c0_2, %c0_3] : memref<8x32xf32, #tpu.memory_space<vmem>>, vector<8x32xf32>
    %2 = vector.shape_cast %1 : vector<8x32xf32> to vector<1x8x32xf32>
    %3 = vector.shape_cast %2 : vector<1x8x32xf32> to vector<1x8x32xf32>
    %4 = vector.broadcast %3 : vector<1x8x32xf32> to vector<2x8x32xf32>
    "tpu.trace_start"() <{level = 10 : i32, message = "bif,brf->bir"}> : () -> ()
    %cst = arith.constant dense<0.000000e+00> : vector<2x8x16xf32>
    %5 = tpu.matmul %4, %0, %cst {dimension_numbers = #tpu.dot_dimension_numbers<[2], [2], [1], [1], [0, 0, 0, 1, 1, 1], [0], [0]>} : vector<2x8x32xf32>, vector<2x16x32xf32>, vector<2x8x16xf32> -> vector<2x8x16xf32>
    "tpu.trace_stop"() : () -> ()
    %cst_4 = arith.constant dense<0xFF800000> : vector<2x8xf32>
    %6 = vector.multi_reduction <maximumf>, %5, %cst_4 [2] : vector<2x8x16xf32> to vector<2x8xf32>
    %7 = vector.shape_cast %6 : vector<2x8xf32> to vector<2x8x1xf32>
    %8 = vector.broadcast %7 : vector<2x8x1xf32> to vector<2x8x16xf32>
    %9 = arith.subf %5, %8 : vector<2x8x16xf32>
    %10 = math.exp %9 : vector<2x8x16xf32>
    %cst_5 = arith.constant dense<0.000000e+00> : vector<2x8xf32>
    %11 = vector.multi_reduction <add>, %10, %cst_5 [2] : vector<2x8x16xf32> to vector<2x8xf32>
    %12 = vector.shape_cast %11 : vector<2x8xf32> to vector<2x8x1xf32>
    %cst_6 = arith.constant 1.000000e+00 : f32
    %13 = vector.broadcast %cst_6 : f32 to vector<2x8x1xf32>
    %14 = arith.divf %13, %12 : vector<2x8x1xf32>
    %15 = vector.broadcast %14 : vector<2x8x1xf32> to vector<2x8x16xf32>
    %16 = arith.mulf %10, %15 : vector<2x8x16xf32>
    "tpu.trace_start"() <{level = 10 : i32, message = "bir,brf->bif"}> : () -> ()
    %cst_7 = arith.constant dense<0.000000e+00> : vector<2x8x32xf32>
    %17 = tpu.matmul %16, %0, %cst_7 {dimension_numbers = #tpu.dot_dimension_numbers<[2], [1], [1], [2], [0, 0, 0, 1, 1, 2], [0], [0]>} : vector<2x8x16xf32>, vector<2x16x32xf32>, vector<2x8x32xf32> -> vector<2x8x32xf32>
    "tpu.trace_stop"() : () -> ()
    %c0_8 = arith.constant 0 : index
    %c0_9 = arith.constant 0 : index
    %c0_10 = arith.constant 0 : index
    %18 = vector.load %arg5[%c0_8, %c0_9, %c0_10] : memref<2x8x32xf32, #tpu.memory_space<vmem>>, vector<2x8x32xf32>
    tpu.vector_store %arg5[%c0_8, %c0_9, %c0_10], %17 {strides = array<i32>} : memref<2x8x32xf32, #tpu.memory_space<vmem>>, vector<2x8x32xf32>,
    %c0_11 = arith.constant 0 : index
    %c0_12 = arith.constant 0 : index
    %19 = vector.load %arg3[%c0_11, %c0_12] : memref<32x16xf32, #tpu.memory_space<vmem>>, vector<32x16xf32>
    %20 = vector.shape_cast %19 : vector<32x16xf32> to vector<1x32x16xf32>
    %21 = vector.shape_cast %20 : vector<1x32x16xf32> to vector<1x32x16xf32>
    %22 = vector.broadcast %21 : vector<1x32x16xf32> to vector<2x32x16xf32>
    "tpu.trace_start"() <{level = 10 : i32, message = "bif,bfv->biv"}> : () -> ()
    %cst_13 = arith.constant dense<0.000000e+00> : vector<2x8x16xf32>
    %23 = tpu.matmul %17, %22, %cst_13 {dimension_numbers = #tpu.dot_dimension_numbers<[2], [1], [1], [2], [0, 0, 0, 1, 1, 2], [0], [0]>} : vector<2x8x32xf32>, vector<2x32x16xf32>, vector<2x8x16xf32> -> vector<2x8x16xf32>
    "tpu.trace_stop"() : () -> ()
    %c0_14 = arith.constant 0 : index
    %c0_15 = arith.constant 0 : index
    %c0_16 = arith.constant 0 : index
    %24 = vector.load %arg4[%c0_14, %c0_15, %c0_16] : memref<1x1x16xf32, #tpu.memory_space<vmem>>, vector<1x1x16xf32>
    %25 = vector.broadcast %24 : vector<1x1x16xf32> to vector<2x8x16xf32>
    %26 = arith.addf %23, %25 : vector<2x8x16xf32>
    %c0_17 = arith.constant 0 : index
    %c0_18 = arith.constant 0 : index
    %c0_19 = arith.constant 0 : index
    %27 = vector.load %arg6[%c0_17, %c0_18, %c0_19] : memref<2x8x16xf32, #tpu.memory_space<vmem>>, vector<2x8x16xf32>
    tpu.vector_store %arg6[%c0_17, %c0_18, %c0_19], %26 {strides = array<i32>} : memref<2x8x16xf32, #tpu.memory_space<vmem>>, vector<2x8x16xf32>,
    %cst_20 = arith.constant dense<0.000000e+00> : vector<2x32xf32>
    %28 = vector.multi_reduction <add>, %0, %cst_20 [1] : vector<2x16x32xf32> to vector<2x32xf32>
    %29 = vector.shape_cast %28 : vector<2x32xf32> to vector<2x1x32xf32>
    %cst_21 = arith.constant 1.600000e+01 : f32
    %30 = vector.broadcast %cst_21 : f32 to vector<2x1x32xf32>
    %31 = arith.divf %29, %30 : vector<2x1x32xf32>
    %c0_22 = arith.constant 0 : index
    %c0_23 = arith.constant 0 : index
    %c0_24 = arith.constant 0 : index
    %32 = vector.load %arg7[%c0_22, %c0_23, %c0_24] : memref<2x1x32xf32, #tpu.memory_space<vmem>>, vector<2x1x32xf32>
    tpu.vector_store %arg7[%c0_22, %c0_23, %c0_24], %31 {strides = array<i32>} : memref<2x1x32xf32, #tpu.memory_space<vmem>>, vector<2x1x32xf32>,
    return
  }
  func.func @transform_0(%arg0: i32) -> (i32, i32, i32) {
    %c0_i32 = arith.constant 0 : i32
    %c0_i32_0 = arith.constant 0 : i32
    %c0_i32_1 = arith.constant 0 : i32
    return %arg0, %c0_i32, %c0_i32_0 : i32, i32, i32
  }
  func.func @transform_1(%arg0: i32) -> (i32, i32) {
    %c0_i32 = arith.constant 0 : i32
    %c0_i32_0 = arith.constant 0 : i32
    %c0_i32_1 = arith.constant 0 : i32
    return %c0_i32, %c0_i32_0 : i32, i32
  }
  func.func @transform_2(%arg0: i32) -> (i32, i32) {
    %c0_i32 = arith.constant 0 : i32
    %c0_i32_0 = arith.constant 0 : i32
    %c0_i32_1 = arith.constant 0 : i32
    return %c0_i32, %c0_i32_0 : i32, i32
  }
  func.func @transform_3(%arg0: i32) -> (i32, i32, i32) {
    %c0_i32 = arith.constant 0 : i32
    %c0_i32_0 = arith.constant 0 : i32
    %c0_i32_1 = arith.constant 0 : i32
    %c0_i32_2 = arith.constant 0 : i32
    return %c0_i32, %c0_i32_0, %c0_i32_1 : i32, i32, i32
  }
  func.func @transform_4(%arg0: i32) -> (i32, i32, i32) {
    %c0_i32 = arith.constant 0 : i32
    %c0_i32_0 = arith.constant 0 : i32
    %c0_i32_1 = arith.constant 0 : i32
    return %arg0, %c0_i32, %c0_i32_0 : i32, i32, i32
  }
  func.func @transform_5(%arg0: i32) -> (i32, i32, i32) {
    %c0_i32 = arith.constant 0 : i32
    %c0_i32_0 = arith.constant 0 : i32
    %c0_i32_1 = arith.constant 0 : i32
    return %arg0, %c0_i32, %c0_i32_0 : i32, i32, i32
  }
  func.func @transform_6(%arg0: i32) -> (i32, i32, i32) {
    %c0_i32 = arith.constant 0 : i32
    %c0_i32_0 = arith.constant 0 : i32
    %c0_i32_1 = arith.constant 0 : i32
    return %arg0, %c0_i32, %c0_i32_0 : i32, i32, i32
  }
}

</mosaic_0001>

<llo_original>
// kernel: tpu_custom_call.1
$region0: #{tpu_custom_call.1}
  #allocation0 [shape = 'u32[]', space=smem, size = 0x4, offset = 0x4, fixed_abs, tag = 'smem constant byte address 0x4 - core index']
  #allocation1 [shape = 'u32[144,128]{1,0:T(1,128)}', space=vmem, size = 0x12000, scoped, tag = 'internal scratch']
  %s0 = inlined_call_operand.hbm [shape: f32[4,16,32], index: 0, kind: input, shape index: {}]
  %s1 = inlined_call_operand.vmem [shape: f32[8,32], index: 1, kind: input, shape index: {}]
  %s2 = inlined_call_operand.vmem [shape: f32[32,16], index: 2, kind: input, shape index: {}]
  %s3 = inlined_call_operand.vmem [shape: f32[1,1,16], index: 3, kind: input, shape index: {}]
  %s4 = inlined_call_operand.hbm [shape: f32[4,8,32], index: 4, kind: output, shape index: {0}]
  %s5 = inlined_call_operand.hbm [shape: f32[4,8,16], index: 5, kind: output, shape index: {1}]
  %s6 = inlined_call_operand.hbm [shape: f32[4,1,32], index: 6, kind: output, shape index: {2}]
  %7 = xla_tuple %s4, %s5, %s6
  %s8 = sld [smem:[#allocation0]]
  $region69: #{tpu_custom_call.1} parent=0
    _
  %s10 = ssub.s32 1, %s8
  %s11 = scalar_select 0, %s10, %s8
  $region1: #{tpu_custom_call.1} parent=0
    #allocation2 [shape = 'u8[32768]{0}', space=vmem, size = 0x8000, scoped, tag = 'input window, operand 0']
    #allocation3 [shape = 's32[2]{0}', space=sflag, size = 0x8, scoped, tag = 'scoped memory for tpu_custom_call.1']
    #allocation4 [shape = 's32[2]{0}', space=sflag, size = 0x8, scoped, tag = 'scoped memory for tpu_custom_call.1']
    #allocation5 [shape = 'u8[16384]{0}', space=vmem, size = 0x4000, scoped, tag = 'output window, operand 0']
    #allocation6 [shape = 'u8[16384]{0}', space=vmem, size = 0x4000, scoped, tag = 'output window, operand 1']
    #allocation7 [shape = 's32[2]{0}', space=sflag, size = 0x8, scoped, tag = 'scoped memory for tpu_custom_call.1']
    #allocation8 [shape = 'u8[2048]{0}', space=vmem, size = 0x800, scoped, tag = 'output window, operand 2']
    %12 = vsyncpa [#allocation3], 0
    %s13 = scalar_lea.sflag [#allocation3], 1
    %14 = vsyncpa %s13, 0
    %15 = vsyncpa [#allocation4], 0
    %s16 = scalar_lea.sflag [#allocation4], 1
    %17 = vsyncpa %s16, 0
    %18 = vsyncpa [#allocation7], 0
    %s19 = scalar_lea.sflag [#allocation7], 1
    %20 = vsyncpa %s19, 0
    loop: start=0, step=1, limit=4
    $region2: #{tpu_custom_call.1} parent=1 // loop_pre_header
      _
    $region3: #{tpu_custom_call.1} parent=1 // loop_header
      %s22 = sphi 0, %s26
      %p23 = scmp.ge.s32.totalorder %s22, 4
      %s32 = sphi 0, %s34
      %s35 = sphi 0, %s32
      %s36 = sphi 0, %s35
      %s52 = sphi 0, %s36
      %s56 = sphi 0, %s56
      %s58 = sphi 0, %s56
      %s59 = sphi 0, %s58
      %s73 = sphi 0, %s59
      %s77 = sphi 0, %s77
      %s79 = sphi 0, %s77
      %s80 = sphi 0, %s79
      %s94 = sphi 0, %s80
      %s98 = sphi 0, %s98
      %s100 = sphi 0, %s98
      %s101 = sphi 0, %s100
      %s115 = sphi 0, %s101
      %s121 = sphi 0, %s123
      %s124 = sphi 0, %s121
      %s125 = sphi 0, %s124
      %s141 = sphi 0, %s125
      %s147 = sphi 0, %s149
      %s150 = sphi 0, %s147
      %s151 = sphi 0, %s150
      %s167 = sphi 0, %s151
      %s173 = sphi 0, %s175
      %s176 = sphi 0, %s173
      %s177 = sphi 0, %s176
      %s193 = sphi 0, %s177
    $region4: #{tpu_custom_call.1} parent=1 // loop_header_branch
      %25 = sbr.rel (%p23) target = $region8
    $region5: #{tpu_custom_call.1} parent=1 // loop_body
      %s27 = ssub.s32 %s22, 1
      %s28 = ssub.s32 %s22, 2
      %s29 = sadd.s32 %s22, 1
      %s30 = ssub.s32 %s22, %s29
      %p31 = scmp.eq.s32.totalorder %s30, 0
      %s33 = sadd.s32 %s32, 1
      %s34 = scalar_select %p31, %s32, %s33
      %p37 = pneg %p31
      %p38 = scmp.eq.s32.totalorder %s22, 1
      %p39 = por %p37, %p38
      %p40 = scmp.ne.s32.totalorder %s32, %s35
      %p41 = scmp.eq.s32.totalorder %s22, 0
      %p42 = por %p40, %p41
      %p43 = scmp.ne.s32.totalorder %s32, %s35
      %p44 = scmp.eq.s32.totalorder %s27, 1
      %p45 = por %p43, %p44
      %p46 = scmp.ne.s32.totalorder %s35, %s36
      %p47 = scmp.eq.s32.totalorder %s27, 0
      %p48 = por %p46, %p47
      %p49 = scmp.ne.s32.totalorder %s35, %s36
      %p50 = scmp.eq.s32.totalorder %s28, 1
      %p51 = por %p49, %p50
      %p53 = scmp.ne.s32.totalorder %s36, %s52
      %p54 = scmp.eq.s32.totalorder %s28, 0
      %p55 = por %p53, %p54
      %s57 = sadd.s32 %s56, 1
      %p60 = scmp.eq.s32.totalorder %s22, 1
      %p61 = scmp.ne.s32.totalorder %s56, %s58
      %p62 = scmp.eq.s32.totalorder %s22, 0
      %p63 = por %p61, %p62
      %p64 = scmp.ne.s32.totalorder %s56, %s58
      %p65 = scmp.eq.s32.totalorder %s27, 1
      %p66 = por %p64, %p65
      %p67 = scmp.ne.s32.totalorder %s58, %s59
      %p68 = scmp.eq.s32.totalorder %s27, 0
      %p69 = por %p67, %p68
      %p70 = scmp.ne.s32.totalorder %s58, %s59
      %p71 = scmp.eq.s32.totalorder %s28, 1
      %p72 = por %p70, %p71
      %p74 = scmp.ne.s32.totalorder %s59, %s73
      %p75 = scmp.eq.s32.totalorder %s28, 0
      %p76 = por %p74, %p75
      %s78 = sadd.s32 %s77, 1
      %p81 = scmp.eq.s32.totalorder %s22, 1
      %p82 = scmp.ne.s32.totalorder %s77, %s79
      %p83 = scmp.eq.s32.totalorder %s22, 0
      %p84 = por %p82, %p83
      %p85 = scmp.ne.s32.totalorder %s77, %s79
      %p86 = scmp.eq.s32.totalorder %s27, 1
      %p87 = por %p85, %p86
      %p88 = scmp.ne.s32.totalorder %s79, %s80
      %p89 = scmp.eq.s32.totalorder %s27, 0
      %p90 = por %p88, %p89
      %p91 = scmp.ne.s32.totalorder %s79, %s80
      %p92 = scmp.eq.s32.totalorder %s28, 1
      %p93 = por %p91, %p92
      %p95 = scmp.ne.s32.totalorder %s80, %s94
      %p96 = scmp.eq.s32.totalorder %s28, 0
      %p97 = por %p95, %p96
      %s99 = sadd.s32 %s98, 1
      %p102 = scmp.eq.s32.totalorder %s22, 1
      %p103 = scmp.ne.s32.totalorder %s98, %s100
      %p104 = scmp.eq.s32.totalorder %s22, 0
      %p105 = por %p103, %p104
      %p106 = scmp.ne.s32.totalorder %s98, %s100
      %p107 = scmp.eq.s32.totalorder %s27, 1
      %p108 = por %p106, %p107
      %p109 = scmp.ne.s32.totalorder %s100, %s101
      %p110 = scmp.eq.s32.totalorder %s27, 0
      %p111 = por %p109, %p110
      %p112 = scmp.ne.s32.totalorder %s100, %s101
      %p113 = scmp.eq.s32.totalorder %s28, 1
      %p114 = por %p112, %p113
      %p116 = scmp.ne.s32.totalorder %s101, %s115
      %p117 = scmp.eq.s32.totalorder %s28, 0
      %p118 = por %p116, %p117
      %s119 = ssub.s32 %s22, %s29
      %p120 = scmp.eq.s32.totalorder %s119, 0
      %s122 = sadd.s32 %s121, 1
      %s123 = scalar_select %p120, %s121, %s122
      %p126 = pneg %p120
      %p127 = scmp.eq.s32.totalorder %s22, 1
      %p128 = por %p126, %p127
      %p129 = scmp.ne.s32.totalorder %s121, %s124
      %p130 = scmp.eq.s32.totalorder %s22, 0
      %p131 = por %p129, %p130
      %p132 = scmp.ne.s32.totalorder %s121, %s124
      %p133 = scmp.eq.s32.totalorder %s27, 1
      %p134 = por %p132, %p133
      %p135 = scmp.ne.s32.totalorder %s124, %s125
      %p136 = scmp.eq.s32.totalorder %s27, 0
      %p137 = por %p135, %p136
      %p138 = scmp.ne.s32.totalorder %s124, %s125
      %p139 = scmp.eq.s32.totalorder %s28, 1
      %p140 = por %p138, %p139
      %p142 = scmp.ne.s32.totalorder %s125, %s141
      %p143 = scmp.eq.s32.totalorder %s28, 0
      %p144 = por %p142, %p143
      %s145 = ssub.s32 %s22, %s29
      %p146 = scmp.eq.s32.totalorder %s145, 0
      %s148 = sadd.s32 %s147, 1
      %s149 = scalar_select %p146, %s147, %s148
      %p152 = pneg %p146
      %p153 = scmp.eq.s32.totalorder %s22, 1
      %p154 = por %p152, %p153
      %p155 = scmp.ne.s32.totalorder %s147, %s150
      %p156 = scmp.eq.s32.totalorder %s22, 0
      %p157 = por %p155, %p156
      %p158 = scmp.ne.s32.totalorder %s147, %s150
      %p159 = scmp.eq.s32.totalorder %s27, 1
      %p160 = por %p158, %p159
      %p161 = scmp.ne.s32.totalorder %s150, %s151
      %p162 = scmp.eq.s32.totalorder %s27, 0
      %p163 = por %p161, %p162
      %p164 = scmp.ne.s32.totalorder %s150, %s151
      %p165 = scmp.eq.s32.totalorder %s28, 1
      %p166 = por %p164, %p165
      %p168 = scmp.ne.s32.totalorder %s151, %s167
      %p169 = scmp.eq.s32.totalorder %s28, 0
      %p170 = por %p168, %p169
      %s171 = ssub.s32 %s22, %s29
      %p172 = scmp.eq.s32.totalorder %s171, 0
      %s174 = sadd.s32 %s173, 1
      %s175 = scalar_select %p172, %s173, %s174
      %p178 = pneg %p172
      %p179 = scmp.eq.s32.totalorder %s22, 1
      %p180 = por %p178, %p179
      %p181 = scmp.ne.s32.totalorder %s173, %s176
      %p182 = scmp.eq.s32.totalorder %s22, 0
      %p183 = por %p181, %p182
      %p184 = scmp.ne.s32.totalorder %s173, %s176
      %p185 = scmp.eq.s32.totalorder %s27, 1
      %p186 = por %p184, %p185
      %p187 = scmp.ne.s32.totalorder %s176, %s177
      %p188 = scmp.eq.s32.totalorder %s27, 0
      %p189 = por %p187, %p188
      %p190 = scmp.ne.s32.totalorder %s176, %s177
      %p191 = scmp.eq.s32.totalorder %s28, 1
      %p192 = por %p190, %p191
      %p194 = scmp.ne.s32.totalorder %s177, %s193
      %p195 = scmp.eq.s32.totalorder %s28, 0
      %p196 = por %p194, %p195
      %p197 = scmp.le.s32.totalorder 1, %s22
      %p198 = scmp.lt.s32.totalorder %s22, 3
      %p199 = pnand %p197, %p198
      %p200 = pneg %p199
      // Predicated region
      $region9: #{tpu_custom_call.1} parent=5 // pred_check
        _
      $region10: #{tpu_custom_call.1} parent=5 // pred_check_branch
        %202 = sbr.rel (%p199) target = $region12
      $region11: #{tpu_custom_call.1} parent=5 // pred_region
        %s203 = ssub.s32 %s22, 1
        // Predicated region
        $region13: #{tpu_custom_call.1} parent=11 // pred_check
          %p204 = pneg %p69
        $region14: #{tpu_custom_call.1} parent=11 // pred_check_branch
          %206 = sbr.rel (%p204) target = $region16
        $region15: #{tpu_custom_call.1} parent=11 // pred_region
          _
        $region16: #{tpu_custom_call.1} parent=11 // pred_fallthru
          _
        // Predicated region
        $region17: #{tpu_custom_call.1} parent=11 // pred_check
          %p207 = pneg %p90
        $region18: #{tpu_custom_call.1} parent=11 // pred_check_branch
          %209 = sbr.rel (%p207) target = $region20
        $region19: #{tpu_custom_call.1} parent=11 // pred_region
          _
        $region20: #{tpu_custom_call.1} parent=11 // pred_fallthru
          _
        // Predicated region
        $region21: #{tpu_custom_call.1} parent=11 // pred_check
          %p210 = pneg %p111
        $region22: #{tpu_custom_call.1} parent=11 // pred_check_branch
          %212 = sbr.rel (%p210) target = $region24
        $region23: #{tpu_custom_call.1} parent=11 // pred_region
          _
        $region24: #{tpu_custom_call.1} parent=11 // pred_fallthru
          _
      $region12: #{tpu_custom_call.1} parent=5 // pred_fallthru
        _
      %p213 = scmp.lt.s32.totalorder %s22, 2
      // Predicated region
      $region25: #{tpu_custom_call.1} parent=5 // pred_check
        %p214 = pneg %p213
      $region26: #{tpu_custom_call.1} parent=5 // pred_check_branch
        %216 = sbr.rel (%p214) target = $region28
      $region27: #{tpu_custom_call.1} parent=5 // pred_region
        // Predicated region
        $region29: #{tpu_custom_call.1} parent=27 // pred_check
          %p217 = pneg %p42
        $region30: #{tpu_custom_call.1} parent=27 // pred_check_branch
          %219 = sbr.rel (%p217) target = $region32
        $region31: #{tpu_custom_call.1} parent=27 // pred_region
          %s220 = sand.u32 %s32, 1
          %s221 = scalar_lea.sflag [#allocation3], %s220
          %s222 = sand.u32 %s32, 1
          %s223 = smul.addr %s222, 32
          %s224 = scalar_lea.vmem [#allocation2], %s223
          %s225 = smul.u32 2, %s22
          %s227 = ssub.s32 512, 512
          %228 = vsyncadd %s221, %s227
          %s229 = smul.addr %s225, 2
          %s230 = smul.addr %s229, 128
          %s231 = scalar_lea.hbm %s0, %s230
          %s232 = sshll.u32 %s224, 4
          %s233 = int_to_ptr.vmem [resolvable:$true] %s232
          %238 = dma.hbm_to_vmem [thread:$0]  %s231, 512, %s233, %s221, 128, 128, 8
        $region32: #{tpu_custom_call.1} parent=27 // pred_fallthru
          _
      $region28: #{tpu_custom_call.1} parent=5 // pred_fallthru
        _
      %p239 = scmp.le.s32.totalorder 1, %s22
      %p240 = scmp.lt.s32.totalorder %s22, 3
      %p241 = pnand %p239, %p240
      %p242 = pneg %p241
      // Predicated region
      $region33: #{tpu_custom_call.1} parent=5 // pred_check
        _
      $region34: #{tpu_custom_call.1} parent=5 // pred_check_branch
        %244 = sbr.rel (%p241) target = $region36
      $region35: #{tpu_custom_call.1} parent=5 // pred_region
        %s245 = ssub.s32 %s22, 1
        %s246 = sand.u32 %s35, 1
        %s247 = scalar_lea.sflag [#allocation3], %s246
        %s248 = sand.u32 %s35, 1
        %s249 = smul.addr %s248, 32
        %s250 = scalar_lea.vmem [#allocation2], %s249
        // Predicated region
        $region37: #{tpu_custom_call.1} parent=35 // pred_check
          %p251 = pneg %p48
        $region38: #{tpu_custom_call.1} parent=35 // pred_check_branch
          %253 = sbr.rel (%p251) target = $region40
        $region39: #{tpu_custom_call.1} parent=35 // pred_region
          %254 = dma.done %s247, 512
        $region40: #{tpu_custom_call.1} parent=35 // pred_fallthru
          _
        %s255 = sand.u32 %s35, 1
        %s256 = scalar_lea.sflag [#allocation3], %s255
        %s257 = sand.u32 %s35, 1
        %s258 = smul.addr %s257, 32
        %s259 = scalar_lea.vmem [#allocation2], %s258
        %p260 = pneg %p48
        %p261 = pneg %p45
        %p262 = pneg %p69
        %p263 = pneg %p66
        %p264 = pneg %p90
        %p265 = pneg %p87
        %p266 = pneg %p111
        %p267 = pneg %p108
        %p268 = pneg %p137
        %p269 = pneg %p134
        %s270 = sand.u32 %s124, 1
        %s271 = scalar_lea.sflag [#allocation4], %s270
        %s272 = sand.u32 %s124, 1
        %s273 = smul.addr %s272, 16
        %s274 = scalar_lea.vmem [#allocation5], %s273
        %p275 = pneg %p163
        %p276 = pneg %p160
        %s277 = sand.u32 %s27, 1
        %s278 = scalar_lea.sflag [#allocation7], %s277
        %s279 = sand.u32 %s150, 1
        %s280 = smul.addr %s279, 16
        %s281 = scalar_lea.vmem [#allocation6], %s280
        %p282 = pneg %p189
        %p283 = pneg %p186
        %s284 = sand.u32 %s27, 1
        %s285 = scalar_lea.sflag [#allocation7], %s284
        %s286 = sand.u32 %s176, 1
        %s287 = smul.addr %s286, 2
        %s288 = scalar_lea.vmem [#allocation8], %s287
        %s289 = smul.u32 2, %s27
        %s290 = smul.u32 2, %s27
        %s291 = smul.u32 2, %s27
        %s292 = smul.u32 2, %s27
        %v293 = vld [vmem:[%s250] sm:$0xff]
        %v294 = vld [vmem:[%s250 + $0x8] sm:$0xff]
        %v295 = vld [vmem:[%s250 + $0x10] sm:$0xff]
        %v296 = vld [vmem:[%s250 + $0x18] sm:$0xff]
        %v297 = vld [vmem:[%s1] sm:$0xff]
        %vm298 = vcmask 261120
        %v300 = vsel %vm298, %v297, 0
        %v303 = vsel %vm298, %v293, 0
        %v306 = vsel %vm298, %v294, 0
        %308 = vmatprep.subr.mxu0 0.0
        %309 = vmatpush1.xpose.msra.mxu0 %v303
        %310 = vmatprep.subr.mxu0 0.0
        %311 = vmatpush1.xpose.msra.mxu0 %v306
        %312 = vmatprep.subr.mxu0 0.0
        %313 = vmatpush1.xpose.msra.mxu0 0.0
        %314 = vmatprep.subr.mxu0 0.0
        %315 = vmatpush1.xpose.msra.mxu0 0.0
        %316 = vmatprep.subr.mxu0 0.0
        %317 = vmatpush1.xpose.msra.mxu0 0.0
        %318 = vmatprep.subr.mxu0 0.0
        %319 = vmatpush1.xpose.msra.mxu0 0.0
        %320 = vmatprep.subr.mxu0 0.0
        %321 = vmatpush1.xpose.msra.mxu0 0.0
        %322 = vmatprep.subr.mxu0 0.0
        %323 = vmatpush1.xpose.msra.mxu0 0.0
        %324 = vmatprep.subr.mxu0 0.0
        %325 = vmatpush1.xpose.msra.mxu0 0.0
        %326 = vmatprep.subr.mxu0 0.0
        %327 = vmatpush1.xpose.msra.mxu0 0.0
        %328 = vmatprep.subr.mxu0 0.0
        %329 = vmatpush1.xpose.msra.mxu0 0.0
        %330 = vmatprep.subr.mxu0 0.0
        %331 = vmatpush1.xpose.msra.mxu0 0.0
        %332 = vmatprep.subr.mxu0 0.0
        %333 = vmatpush1.xpose.msra.mxu0 0.0
        %334 = vmatprep.subr.mxu0 0.0
        %335 = vmatpush1.xpose.msra.mxu0 0.0
        %336 = vmatprep.subr.mxu0 0.0
        %337 = vmatpush1.xpose.msra.mxu0 0.0
        %338 = vmatprep.subr.mxu0 0.0
        %339 = vmatpush1.xpose.msra.mxu0 0.0
        %340 = vmatprep.subr.mxu0 0.0
        %341 = vmatpush1.xpose.msra.mxu0 0.0
        %342 = vmatprep.subr.mxu0 0.0
        %343 = vmatpush1.xpose.msra.mxu0 0.0
        %344 = vmatprep.subr.mxu0 0.0
        %345 = vmatpush1.xpose.msra.mxu0 0.0
        %346 = vmatprep.subr.mxu0 0.0
        %347 = vmatpush1.xpose.msra.mxu0 0.0
        %348 = vmatprep.subr.mxu0 0.0
        %349 = vmatpush1.xpose.msra.mxu0 0.0
        %350 = vmatprep.subr.mxu0 0.0
        %351 = vmatpush1.xpose.msra.mxu0 0.0
        %352 = vmatprep.subr.mxu0 0.0
        %353 = vmatpush1.xpose.msra.mxu0 0.0
        %354 = vmatprep.subr.mxu0 0.0
        %355 = vmatpush1.xpose.msra.mxu0 0.0
        %356 = vmatprep.subr.mxu0 0.0
        %357 = vmatpush1.xpose.msra.mxu0 0.0
        %358 = vmatprep.subr.mxu0 0.0
        %359 = vmatpush1.xpose.msra.mxu0 0.0
        %360 = vmatprep.subr.mxu0 0.0
        %361 = vmatpush1.xpose.msra.mxu0 0.0
        %362 = vmatprep.subr.mxu0 0.0
        %363 = vmatpush1.xpose.msra.mxu0 0.0
        %364 = vmatprep.subr.mxu0 0.0
        %365 = vmatpush1.xpose.msra.mxu0 0.0
        %366 = vmatprep.subr.mxu0 0.0
        %367 = vmatpush1.xpose.msra.mxu0 0.0
        %368 = vmatprep.subr.mxu0 0.0
        %369 = vmatpush1.xpose.msra.mxu0 0.0
        %370 = vmatprep.subr.mxu0 0.0
        %371 = vmatpush1.xpose.msra.mxu0 0.0
        %372 = vmatprep.mubr.f32.mxu0 0.0
        %373 = vmatmul.mubr.f32.gmra.mrb[0].mxu0 %v300
        %v374 = vpop.f32.mrb[0].mxu0
        %v375 = vadd.f32 0.0, %v374
        %v376 = vpop.f32.mrb[0].mxu0
        %377 = vdwg.mxu0
        %v379 = vsel %vm298, %v295, 0
        %v382 = vsel %vm298, %v296, 0
        %384 = vmatprep.subr.mxu0 0.0
        %385 = vmatpush1.xpose.msra.mxu0 %v379
        %386 = vmatprep.subr.mxu0 0.0
        %387 = vmatpush1.xpose.msra.mxu0 %v382
        %388 = vmatprep.subr.mxu0 0.0
        %389 = vmatpush1.xpose.msra.mxu0 0.0
        %390 = vmatprep.subr.mxu0 0.0
        %391 = vmatpush1.xpose.msra.mxu0 0.0
        %392 = vmatprep.subr.mxu0 0.0
        %393 = vmatpush1.xpose.msra.mxu0 0.0
        %394 = vmatprep.subr.mxu0 0.0
        %395 = vmatpush1.xpose.msra.mxu0 0.0
        %396 = vmatprep.subr.mxu0 0.0
        %397 = vmatpush1.xpose.msra.mxu0 0.0
        %398 = vmatprep.subr.mxu0 0.0
        %399 = vmatpush1.xpose.msra.mxu0 0.0
        %400 = vmatprep.subr.mxu0 0.0
        %401 = vmatpush1.xpose.msra.mxu0 0.0
        %402 = vmatprep.subr.mxu0 0.0
        %403 = vmatpush1.xpose.msra.mxu0 0.0
        %404 = vmatprep.subr.mxu0 0.0
        %405 = vmatpush1.xpose.msra.mxu0 0.0
        %406 = vmatprep.subr.mxu0 0.0
        %407 = vmatpush1.xpose.msra.mxu0 0.0
        %408 = vmatprep.subr.mxu0 0.0
        %409 = vmatpush1.xpose.msra.mxu0 0.0
        %410 = vmatprep.subr.mxu0 0.0
        %411 = vmatpush1.xpose.msra.mxu0 0.0
        %412 = vmatprep.subr.mxu0 0.0
        %413 = vmatpush1.xpose.msra.mxu0 0.0
        %414 = vmatprep.subr.mxu0 0.0
        %415 = vmatpush1.xpose.msra.mxu0 0.0
        %416 = vmatprep.subr.mxu0 0.0
        %417 = vmatpush1.xpose.msra.mxu0 0.0
        %418 = vmatprep.subr.mxu0 0.0
        %419 = vmatpush1.xpose.msra.mxu0 0.0
        %420 = vmatprep.subr.mxu0 0.0
        %421 = vmatpush1.xpose.msra.mxu0 0.0
        %422 = vmatprep.subr.mxu0 0.0
        %423 = vmatpush1.xpose.msra.mxu0 0.0
        %424 = vmatprep.subr.mxu0 0.0
        %425 = vmatpush1.xpose.msra.mxu0 0.0
        %426 = vmatprep.subr.mxu0 0.0
        %427 = vmatpush1.xpose.msra.mxu0 0.0
        %428 = vmatprep.subr.mxu0 0.0
        %429 = vmatpush1.xpose.msra.mxu0 0.0
        %430 = vmatprep.subr.mxu0 0.0
        %431 = vmatpush1.xpose.msra.mxu0 0.0
        %432 = vmatprep.subr.mxu0 0.0
        %433 = vmatpush1.xpose.msra.mxu0 0.0
        %434 = vmatprep.subr.mxu0 0.0
        %435 = vmatpush1.xpose.msra.mxu0 0.0
        %436 = vmatprep.subr.mxu0 0.0
        %437 = vmatpush1.xpose.msra.mxu0 0.0
        %438 = vmatprep.subr.mxu0 0.0
        %439 = vmatpush1.xpose.msra.mxu0 0.0
        %440 = vmatprep.subr.mxu0 0.0
        %441 = vmatpush1.xpose.msra.mxu0 0.0
        %442 = vmatprep.subr.mxu0 0.0
        %443 = vmatpush1.xpose.msra.mxu0 0.0
        %444 = vmatprep.subr.mxu0 0.0
        %445 = vmatpush1.xpose.msra.mxu0 0.0
        %446 = vmatprep.subr.mxu0 0.0
        %447 = vmatpush1.xpose.msra.mxu0 0.0
        %448 = vmatprep.mubr.f32.mxu0 0.0
        %449 = vmatmul.mubr.f32.gmra.mrb[0].mxu0 %v300
        %v450 = vpop.f32.mrb[0].mxu0
        %v451 = vadd.f32 0.0, %v450
        %v452 = vpop.f32.mrb[0].mxu0
        %453 = vdwg.mxu0
        %vm454 = vcmask 130048
        %v455 = vsel %vm454, %v375, -inf
        %456 = vmax.xlane.f32.xlu0 %v455
        %v457 = vpop.xlane.xlu0 %456
        %v458 = vsel %vm454, %v451, -inf
        %459 = vmax.xlane.f32.xlu0 %v458
        %v460 = vpop.xlane.xlu0 %459
        %v461 = vsub.f32 %v375, %v457
        %v462 = vsub.f32 %v451, %v460
        %v463 = vmul.f32 %v461, 1.442695
        %v464 = vpow.pop %v463
        %v465 = vmul.f32 %v462, 1.442695
        %v466 = vpow.pop %v465
        %v467 = vsel %vm454, %v464, 0.0
        %468 = vadd.xlane.f32.xlu0 %v467
        %v469 = vpop.xlane.xlu0 %468
        %v470 = vsel %vm454, %v466, 0.0
        %471 = vadd.xlane.f32.xlu0 %v470
        %v472 = vpop.xlane.xlu0 %471
        %v473 = vrcp.pop %v469
        %v474 = vmul.f32 1.0, %v473
        %v475 = vrcp.pop %v472
        %v476 = vmul.f32 1.0, %v475
        %v477 = vmul.f32 %v464, %v474
        %v478 = vmul.f32 %v466, %v476
        %v480 = vsel %vm454, %v477, 0
        %482 = vmatprep.subr.mxu0 0.0
        %483 = vmatpush1.msra.mxu0 %v293
        %484 = vmatprep.subr.mxu0 0.0
        %485 = vmatpush1.msra.mxu0 %v294
        %486 = vmatprep.subr.mxu0 0.0
        %487 = vmatpush1.msra.mxu0 0.0
        %488 = vmatprep.subr.mxu0 0.0
        %489 = vmatpush1.msra.mxu0 0.0
        %490 = vmatprep.subr.mxu0 0.0
        %491 = vmatpush1.msra.mxu0 0.0
        %492 = vmatprep.subr.mxu0 0.0
        %493 = vmatpush1.msra.mxu0 0.0
        %494 = vmatprep.subr.mxu0 0.0
        %495 = vmatpush1.msra.mxu0 0.0
        %496 = vmatprep.subr.mxu0 0.0
        %497 = vmatpush1.msra.mxu0 0.0
        %498 = vmatprep.subr.mxu0 0.0
        %499 = vmatpush1.msra.mxu0 0.0
        %500 = vmatprep.subr.mxu0 0.0
        %501 = vmatpush1.msra.mxu0 0.0
        %502 = vmatprep.subr.mxu0 0.0
        %503 = vmatpush1.msra.mxu0 0.0
        %504 = vmatprep.subr.mxu0 0.0
        %505 = vmatpush1.msra.mxu0 0.0
        %506 = vmatprep.subr.mxu0 0.0
        %507 = vmatpush1.msra.mxu0 0.0
        %508 = vmatprep.subr.mxu0 0.0
        %509 = vmatpush1.msra.mxu0 0.0
        %510 = vmatprep.subr.mxu0 0.0
        %511 = vmatpush1.msra.mxu0 0.0
        %512 = vmatprep.subr.mxu0 0.0
        %513 = vmatpush1.msra.mxu0 0.0
        %514 = vmatprep.subr.mxu0 0.0
        %515 = vmatpush1.msra.mxu0 0.0
        %516 = vmatprep.subr.mxu0 0.0
        %517 = vmatpush1.msra.mxu0 0.0
        %518 = vmatprep.subr.mxu0 0.0
        %519 = vmatpush1.msra.mxu0 0.0
        %520 = vmatprep.subr.mxu0 0.0
        %521 = vmatpush1.msra.mxu0 0.0
        %522 = vmatprep.subr.mxu0 0.0
        %523 = vmatpush1.msra.mxu0 0.0
        %524 = vmatprep.subr.mxu0 0.0
        %525 = vmatpush1.msra.mxu0 0.0
        %526 = vmatprep.subr.mxu0 0.0
        %527 = vmatpush1.msra.mxu0 0.0
        %528 = vmatprep.subr.mxu0 0.0
        %529 = vmatpush1.msra.mxu0 0.0
        %530 = vmatprep.subr.mxu0 0.0
        %531 = vmatpush1.msra.mxu0 0.0
        %532 = vmatprep.subr.mxu0 0.0
        %533 = vmatpush1.msra.mxu0 0.0
        %534 = vmatprep.subr.mxu0 0.0
        %535 = vmatpush1.msra.mxu0 0.0
        %536 = vmatprep.subr.mxu0 0.0
        %537 = vmatpush1.msra.mxu0 0.0
        %538 = vmatprep.subr.mxu0 0.0
        %539 = vmatpush1.msra.mxu0 0.0
        %540 = vmatprep.subr.mxu0 0.0
        %541 = vmatpush1.msra.mxu0 0.0
        %542 = vmatprep.subr.mxu0 0.0
        %543 = vmatpush1.msra.mxu0 0.0
        %544 = vmatprep.subr.mxu0 0.0
        %545 = vmatpush1.msra.mxu0 0.0
        %546 = vmatprep.mubr.f32.mxu0 0.0
        %547 = vmatmul.mubr.f32.gmra.mrb[0].mxu0 %v480
        %v548 = vpop.f32.mrb[0].mxu0
        %v549 = vadd.f32 0.0, %v548
        %v550 = vpop.f32.mrb[0].mxu0
        %551 = vdwg.mxu0
        %v553 = vsel %vm454, %v478, 0
        %555 = vmatprep.subr.mxu0 0.0
        %556 = vmatpush1.msra.mxu0 %v295
        %557 = vmatprep.subr.mxu0 0.0
        %558 = vmatpush1.msra.mxu0 %v296
        %559 = vmatprep.subr.mxu0 0.0
        %560 = vmatpush1.msra.mxu0 0.0
        %561 = vmatprep.subr.mxu0 0.0
        %562 = vmatpush1.msra.mxu0 0.0
        %563 = vmatprep.subr.mxu0 0.0
        %564 = vmatpush1.msra.mxu0 0.0
        %565 = vmatprep.subr.mxu0 0.0
        %566 = vmatpush1.msra.mxu0 0.0
        %567 = vmatprep.subr.mxu0 0.0
        %568 = vmatpush1.msra.mxu0 0.0
        %569 = vmatprep.subr.mxu0 0.0
        %570 = vmatpush1.msra.mxu0 0.0
        %571 = vmatprep.subr.mxu0 0.0
        %572 = vmatpush1.msra.mxu0 0.0
        %573 = vmatprep.subr.mxu0 0.0
        %574 = vmatpush1.msra.mxu0 0.0
        %575 = vmatprep.subr.mxu0 0.0
        %576 = vmatpush1.msra.mxu0 0.0
        %577 = vmatprep.subr.mxu0 0.0
        %578 = vmatpush1.msra.mxu0 0.0
        %579 = vmatprep.subr.mxu0 0.0
        %580 = vmatpush1.msra.mxu0 0.0
        %581 = vmatprep.subr.mxu0 0.0
        %582 = vmatpush1.msra.mxu0 0.0
        %583 = vmatprep.subr.mxu0 0.0
        %584 = vmatpush1.msra.mxu0 0.0
        %585 = vmatprep.subr.mxu0 0.0
        %586 = vmatpush1.msra.mxu0 0.0
        %587 = vmatprep.subr.mxu0 0.0
        %588 = vmatpush1.msra.mxu0 0.0
        %589 = vmatprep.subr.mxu0 0.0
        %590 = vmatpush1.msra.mxu0 0.0
        %591 = vmatprep.subr.mxu0 0.0
        %592 = vmatpush1.msra.mxu0 0.0
        %593 = vmatprep.subr.mxu0 0.0
        %594 = vmatpush1.msra.mxu0 0.0
        %595 = vmatprep.subr.mxu0 0.0
        %596 = vmatpush1.msra.mxu0 0.0
        %597 = vmatprep.subr.mxu0 0.0
        %598 = vmatpush1.msra.mxu0 0.0
        %599 = vmatprep.subr.mxu0 0.0
        %600 = vmatpush1.msra.mxu0 0.0
        %601 = vmatprep.subr.mxu0 0.0
        %602 = vmatpush1.msra.mxu0 0.0
        %603 = vmatprep.subr.mxu0 0.0
        %604 = vmatpush1.msra.mxu0 0.0
        %605 = vmatprep.subr.mxu0 0.0
        %606 = vmatpush1.msra.mxu0 0.0
        %607 = vmatprep.subr.mxu0 0.0
        %608 = vmatpush1.msra.mxu0 0.0
        %609 = vmatprep.subr.mxu0 0.0
        %610 = vmatpush1.msra.mxu0 0.0
        %611 = vmatprep.subr.mxu0 0.0
        %612 = vmatpush1.msra.mxu0 0.0
        %613 = vmatprep.subr.mxu0 0.0
        %614 = vmatpush1.msra.mxu0 0.0
        %615 = vmatprep.subr.mxu0 0.0
        %616 = vmatpush1.msra.mxu0 0.0
        %617 = vmatprep.subr.mxu0 0.0
        %618 = vmatpush1.msra.mxu0 0.0
        %619 = vmatprep.mubr.f32.mxu0 0.0
        %620 = vmatmul.mubr.f32.gmra.mrb[0].mxu0 %v553
        %v621 = vpop.f32.mrb[0].mxu0
        %v622 = vadd.f32 0.0, %v621
        %v623 = vpop.f32.mrb[0].mxu0
        %624 = vdwg.mxu0
        %625 = vst.msk [vmem:[%s274] sm:$0xff] %vm298, %v549
        %626 = vst.msk [vmem:[%s274 + $0x8] sm:$0xff] %vm298, %v622
        %v627 = vld [vmem:[%s2] sm:$0xff]
        %v628 = vld [vmem:[%s2 + $0x8] sm:$0xff]
        %v629 = vld [vmem:[%s2 + $0x10] sm:$0xff]
        %v630 = vld [vmem:[%s2 + $0x18] sm:$0xff]
        %v631 = vld [vmem:[%s3] sm:$0x1]
        %v633 = vlaneseq
        %v634 = vshrl.u32 %v633, 7
        %v635 = vsub.s32 0, %v634
        %v636 = vrot.slane %v631, %v635
        %v639 = vsel %vm298, %v549, 0
        %641 = vmatprep.subr.mxu0 0.0
        %642 = vmatpush1.msra.mxu0 %v627
        %643 = vmatprep.subr.mxu0 0.0
        %644 = vmatpush1.msra.mxu0 %v628
        %645 = vmatprep.subr.mxu0 0.0
        %646 = vmatpush1.msra.mxu0 %v629
        %647 = vmatprep.subr.mxu0 0.0
        %648 = vmatpush1.msra.mxu0 %v630
        %649 = vmatprep.subr.mxu0 0.0
        %650 = vmatpush1.msra.mxu0 0.0
        %651 = vmatprep.subr.mxu0 0.0
        %652 = vmatpush1.msra.mxu0 0.0
        %653 = vmatprep.subr.mxu0 0.0
        %654 = vmatpush1.msra.mxu0 0.0
        %655 = vmatprep.subr.mxu0 0.0
        %656 = vmatpush1.msra.mxu0 0.0
        %657 = vmatprep.subr.mxu0 0.0
        %658 = vmatpush1.msra.mxu0 0.0
        %659 = vmatprep.subr.mxu0 0.0
        %660 = vmatpush1.msra.mxu0 0.0
        %661 = vmatprep.subr.mxu0 0.0
        %662 = vmatpush1.msra.mxu0 0.0
        %663 = vmatprep.subr.mxu0 0.0
        %664 = vmatpush1.msra.mxu0 0.0
        %665 = vmatprep.subr.mxu0 0.0
        %666 = vmatpush1.msra.mxu0 0.0
        %667 = vmatprep.subr.mxu0 0.0
        %668 = vmatpush1.msra.mxu0 0.0
        %669 = vmatprep.subr.mxu0 0.0
        %670 = vmatpush1.msra.mxu0 0.0
        %671 = vmatprep.subr.mxu0 0.0
        %672 = vmatpush1.msra.mxu0 0.0
        %673 = vmatprep.subr.mxu0 0.0
        %674 = vmatpush1.msra.mxu0 0.0
        %675 = vmatprep.subr.mxu0 0.0
        %676 = vmatpush1.msra.mxu0 0.0
        %677 = vmatprep.subr.mxu0 0.0
        %678 = vmatpush1.msra.mxu0 0.0
        %679 = vmatprep.subr.mxu0 0.0
        %680 = vmatpush1.msra.mxu0 0.0
        %681 = vmatprep.subr.mxu0 0.0
        %682 = vmatpush1.msra.mxu0 0.0
        %683 = vmatprep.subr.mxu0 0.0
        %684 = vmatpush1.msra.mxu0 0.0
        %685 = vmatprep.subr.mxu0 0.0
        %686 = vmatpush1.msra.mxu0 0.0
        %687 = vmatprep.subr.mxu0 0.0
        %688 = vmatpush1.msra.mxu0 0.0
        %689 = vmatprep.subr.mxu0 0.0
        %690 = vmatpush1.msra.mxu0 0.0
        %691 = vmatprep.subr.mxu0 0.0
        %692 = vmatpush1.msra.mxu0 0.0
        %693 = vmatprep.subr.mxu0 0.0
        %694 = vmatpush1.msra.mxu0 0.0
        %695 = vmatprep.subr.mxu0 0.0
        %696 = vmatpush1.msra.mxu0 0.0
        %697 = vmatprep.subr.mxu0 0.0
        %698 = vmatpush1.msra.mxu0 0.0
        %699 = vmatprep.subr.mxu0 0.0
        %700 = vmatpush1.msra.mxu0 0.0
        %701 = vmatprep.subr.mxu0 0.0
        %702 = vmatpush1.msra.mxu0 0.0
        %703 = vmatprep.subr.mxu0 0.0
        %704 = vmatpush1.msra.mxu0 0.0
        %705 = vmatprep.mubr.f32.mxu0 0.0
        %706 = vmatmul.mubr.f32.gmra.mrb[0].mxu0 %v639
        %v707 = vpop.f32.mrb[0].mxu0
        %v708 = vadd.f32 %v636, %v707
        %v709 = vpop.f32.mrb[0].mxu0
        %710 = vdwg.mxu0
        %v712 = vsel %vm298, %v622, 0
        %714 = vmatprep.subr.mxu0 0.0
        %715 = vmatpush1.msra.mxu0 %v627
        %716 = vmatprep.subr.mxu0 0.0
        %717 = vmatpush1.msra.mxu0 %v628
        %718 = vmatprep.subr.mxu0 0.0
        %719 = vmatpush1.msra.mxu0 %v629
        %720 = vmatprep.subr.mxu0 0.0
        %721 = vmatpush1.msra.mxu0 %v630
        %722 = vmatprep.subr.mxu0 0.0
        %723 = vmatpush1.msra.mxu0 0.0
        %724 = vmatprep.subr.mxu0 0.0
        %725 = vmatpush1.msra.mxu0 0.0
        %726 = vmatprep.subr.mxu0 0.0
        %727 = vmatpush1.msra.mxu0 0.0
        %728 = vmatprep.subr.mxu0 0.0
        %729 = vmatpush1.msra.mxu0 0.0
        %730 = vmatprep.subr.mxu0 0.0
        %731 = vmatpush1.msra.mxu0 0.0
        %732 = vmatprep.subr.mxu0 0.0
        %733 = vmatpush1.msra.mxu0 0.0
        %734 = vmatprep.subr.mxu0 0.0
        %735 = vmatpush1.msra.mxu0 0.0
        %736 = vmatprep.subr.mxu0 0.0
        %737 = vmatpush1.msra.mxu0 0.0
        %738 = vmatprep.subr.mxu0 0.0
        %739 = vmatpush1.msra.mxu0 0.0
        %740 = vmatprep.subr.mxu0 0.0
        %741 = vmatpush1.msra.mxu0 0.0
        %742 = vmatprep.subr.mxu0 0.0
        %743 = vmatpush1.msra.mxu0 0.0
        %744 = vmatprep.subr.mxu0 0.0
        %745 = vmatpush1.msra.mxu0 0.0
        %746 = vmatprep.subr.mxu0 0.0
        %747 = vmatpush1.msra.mxu0 0.0
        %748 = vmatprep.subr.mxu0 0.0
        %749 = vmatpush1.msra.mxu0 0.0
        %750 = vmatprep.subr.mxu0 0.0
        %751 = vmatpush1.msra.mxu0 0.0
        %752 = vmatprep.subr.mxu0 0.0
        %753 = vmatpush1.msra.mxu0 0.0
        %754 = vmatprep.subr.mxu0 0.0
        %755 = vmatpush1.msra.mxu0 0.0
        %756 = vmatprep.subr.mxu0 0.0
        %757 = vmatpush1.msra.mxu0 0.0
        %758 = vmatprep.subr.mxu0 0.0
        %759 = vmatpush1.msra.mxu0 0.0
        %760 = vmatprep.subr.mxu0 0.0
        %761 = vmatpush1.msra.mxu0 0.0
        %762 = vmatprep.subr.mxu0 0.0
        %763 = vmatpush1.msra.mxu0 0.0
        %764 = vmatprep.subr.mxu0 0.0
        %765 = vmatpush1.msra.mxu0 0.0
        %766 = vmatprep.subr.mxu0 0.0
        %767 = vmatpush1.msra.mxu0 0.0
        %768 = vmatprep.subr.mxu0 0.0
        %769 = vmatpush1.msra.mxu0 0.0
        %770 = vmatprep.subr.mxu0 0.0
        %771 = vmatpush1.msra.mxu0 0.0
        %772 = vmatprep.subr.mxu0 0.0
        %773 = vmatpush1.msra.mxu0 0.0
        %774 = vmatprep.subr.mxu0 0.0
        %775 = vmatpush1.msra.mxu0 0.0
        %776 = vmatprep.subr.mxu0 0.0
        %777 = vmatpush1.msra.mxu0 0.0
        %778 = vmatprep.mubr.f32.mxu0 0.0
        %779 = vmatmul.mubr.f32.gmra.mrb[0].mxu0 %v712
        %v780 = vpop.f32.mrb[0].mxu0
        %v781 = vadd.f32 %v636, %v780
        %v782 = vpop.f32.mrb[0].mxu0
        %783 = vdwg.mxu0
        %784 = vst.msk [vmem:[%s281] sm:$0xff] %vm454, %v708
        %785 = vst.msk [vmem:[%s281 + $0x8] sm:$0xff] %vm454, %v781
        %v786 = vsel %vm298, %v293, 0.0
        %v787 = vsel %vm298, %v294, 0.0
        %v788 = vadd.f32 %v786, %v787
        %v789 = vrot.slane %v788, 4
        %v790 = vadd.f32 %v788, %v789
        %v791 = vrot.slane %v790, 2
        %v792 = vadd.f32 %v790, %v791
        %v793 = vrot.slane %v792, 1
        %v794 = vadd.f32 %v792, %v793
        %v795 = vsel %vm298, %v295, 0.0
        %v796 = vsel %vm298, %v296, 0.0
        %v797 = vadd.f32 %v795, %v796
        %v798 = vrot.slane %v797, 4
        %v799 = vadd.f32 %v797, %v798
        %v800 = vrot.slane %v799, 2
        %v801 = vadd.f32 %v799, %v800
        %v802 = vrot.slane %v801, 1
        %v803 = vadd.f32 %v801, %v802
        %v804 = vrcp.pop 16.0
        %v805 = vmul.f32 %v794, %v804
        %v806 = vmul.f32 %v803, %v804
        %vm807 = vcmask 253952
        %808 = vst.msk [vmem:[%s288] sm:$0x1] %vm807, %v805
        %809 = vst.msk [vmem:[%s288 + $0x1] sm:$0x1] %vm807, %v806
        %s810 = sand.u32 %s124, 1
        %s811 = scalar_lea.sflag [#allocation4], %s810
        %s812 = sand.u32 %s124, 1
        %s813 = smul.addr %s812, 16
        %s814 = scalar_lea.vmem [#allocation5], %s813
        %s815 = sand.u32 %s27, 1
        %s816 = scalar_lea.sflag [#allocation7], %s815
        %s817 = sand.u32 %s150, 1
        %s818 = smul.addr %s817, 16
        %s819 = scalar_lea.vmem [#allocation6], %s818
        %s820 = sand.u32 %s27, 1
        %s821 = scalar_lea.sflag [#allocation7], %s820
        %s822 = sand.u32 %s176, 1
        %s823 = smul.addr %s822, 2
        %s824 = scalar_lea.vmem [#allocation8], %s823
        // Predicated region
        $region41: #{tpu_custom_call.1} parent=35 // pred_check
          %p825 = pneg %p134
        $region42: #{tpu_custom_call.1} parent=35 // pred_check_branch
          %827 = sbr.rel (%p825) target = $region44
        $region43: #{tpu_custom_call.1} parent=35 // pred_region
          %s828 = smul.u32 2, %s27
          %s830 = ssub.s32 256, 256
          %831 = vsyncadd %s811, %s830
          %s832 = smul.addr %s828, 128
          %s833 = scalar_lea.hbm %s4, %s832
          %s834 = sshll.u32 %s814, 4
          %s835 = int_to_ptr.vmem [resolvable:$true] %s834
          %840 = dma.vmem_to_hbm [thread:$0]  %s835, 256, %s833, %s811, 128, 128, 8
        $region44: #{tpu_custom_call.1} parent=35 // pred_fallthru
          _
        // Predicated region
        $region45: #{tpu_custom_call.1} parent=35 // pred_check
          %p841 = pneg %p160
        $region46: #{tpu_custom_call.1} parent=35 // pred_check_branch
          %843 = sbr.rel (%p841) target = $region48
        $region47: #{tpu_custom_call.1} parent=35 // pred_region
          %s844 = smul.u32 2, %s27
          %s846 = ssub.s32 256, 256
          %847 = vsyncadd %s816, %s846
          %s848 = smul.addr %s844, 128
          %s849 = scalar_lea.hbm %s5, %s848
          %s850 = sshll.u32 %s819, 4
          %s851 = int_to_ptr.vmem [resolvable:$true] %s850
          %856 = dma.vmem_to_hbm [thread:$0]  %s851, 256, %s849, %s816, 128, 128, 8
        $region48: #{tpu_custom_call.1} parent=35 // pred_fallthru
          _
        // Predicated region
        $region49: #{tpu_custom_call.1} parent=35 // pred_check
          %p857 = pneg %p186
        $region50: #{tpu_custom_call.1} parent=35 // pred_check_branch
          %859 = sbr.rel (%p857) target = $region52
        $region51: #{tpu_custom_call.1} parent=35 // pred_region
          %s860 = smul.u32 2, %s27
          %s862 = ssub.s32 32, 32
          %863 = vsyncadd %s821, %s862
          %s864 = smul.addr %s860, 16
          %s865 = scalar_lea.hbm %s6, %s864
          %s866 = sshll.u32 %s824, 4
          %s867 = int_to_ptr.vmem [resolvable:$true] %s866
          %872 = dma.vmem_to_hbm [thread:$0]  %s867, 32, %s865, %s821, 16, 16, 1
        $region52: #{tpu_custom_call.1} parent=35 // pred_fallthru
          _
      $region36: #{tpu_custom_call.1} parent=5 // pred_fallthru
        _
      %p873 = scmp.le.s32.totalorder 2, %s22
      // Predicated region
      $region53: #{tpu_custom_call.1} parent=5 // pred_check
        %p874 = pneg %p873
      $region54: #{tpu_custom_call.1} parent=5 // pred_check_branch
        %876 = sbr.rel (%p874) target = $region56
      $region55: #{tpu_custom_call.1} parent=5 // pred_region
        %s877 = ssub.s32 %s22, 2
        // Predicated region
        $region57: #{tpu_custom_call.1} parent=55 // pred_check
          %p878 = pneg %p140
        $region58: #{tpu_custom_call.1} parent=55 // pred_check_branch
          %880 = sbr.rel (%p878) target = $region60
        $region59: #{tpu_custom_call.1} parent=55 // pred_region
          %s881 = sand.u32 %s125, 1
          %s882 = scalar_lea.sflag [#allocation4], %s881
          %s883 = sand.u32 %s125, 1
          %s884 = smul.addr %s883, 16
          %s885 = scalar_lea.vmem [#allocation5], %s884
          %886 = dma.done %s882, 256
        $region60: #{tpu_custom_call.1} parent=55 // pred_fallthru
          _
        // Predicated region
        $region61: #{tpu_custom_call.1} parent=55 // pred_check
          %p887 = pneg %p166
        $region62: #{tpu_custom_call.1} parent=55 // pred_check_branch
          %889 = sbr.rel (%p887) target = $region64
        $region63: #{tpu_custom_call.1} parent=55 // pred_region
          %s890 = sand.u32 %s28, 1
          %s891 = scalar_lea.sflag [#allocation7], %s890
          %s892 = sand.u32 %s151, 1
          %s893 = smul.addr %s892, 16
          %s894 = scalar_lea.vmem [#allocation6], %s893
          %895 = dma.done %s891, 256
        $region64: #{tpu_custom_call.1} parent=55 // pred_fallthru
          _
        // Predicated region
        $region65: #{tpu_custom_call.1} parent=55 // pred_check
          %p896 = pneg %p192
        $region66: #{tpu_custom_call.1} parent=55 // pred_check_branch
          %898 = sbr.rel (%p896) target = $region68
        $region67: #{tpu_custom_call.1} parent=55 // pred_region
          %s899 = sand.u32 %s28, 1
          %s900 = scalar_lea.sflag [#allocation7], %s899
          %s901 = sand.u32 %s177, 1
          %s902 = smul.addr %s901, 2
          %s903 = scalar_lea.vmem [#allocation8], %s902
          %904 = dma.done %s900, 32
        $region68: #{tpu_custom_call.1} parent=55 // pred_fallthru
          _
      $region56: #{tpu_custom_call.1} parent=5 // pred_fallthru
        _
    $region6: #{tpu_custom_call.1} parent=1 // loop_footer
      %s26 = sadd.s32 1, %s22
    $region7: #{tpu_custom_call.1} parent=1 // loop_footer_branch
      %21 = sbr.rel target = $region3
    $region8: #{tpu_custom_call.1} parent=1 // loop_exit
      _
    %905 = vsyncpa [#allocation3], 1
    %s906 = scalar_lea.sflag [#allocation3], 1
    %907 = vsyncpa %s906, 1
    %908 = vsyncpa [#allocation4], 1
    %s909 = scalar_lea.sflag [#allocation4], 1
    %910 = vsyncpa %s909, 1
    %911 = vsyncpa [#allocation7], 1
    %s912 = scalar_lea.sflag [#allocation7], 1
    %913 = vsyncpa %s912, 1

</llo_original>
